<compile_context>
chip_gen: v7x
topology: tpu7x:2x2x1
jax: 0.10.0
libtpu: 0.0.40
codegen_flags: <defaults>
</compile_context>

<pallas_src>
import math

import jax
import jax.numpy as jnp
from jax.experimental import pallas as pl
from jax.experimental.pallas import tpu as pltpu

OUT_PAD = 128  # lane-dense padded width of the final (hidden -> 1) layer


def critic_kernel(x_ref,
                  w1_ref, b1_ref,
                  w2_ref, b2_ref,
                  w3_ref, b3_ref,
                  w4_ref, b4_ref,
                  o_ref):
    # Layer 1: concat(state, action) @ W1 + b1 (concat done in the wrapper).
    h = jnp.dot(x_ref[...], w1_ref[...], preferred_element_type=jnp.float32) + b1_ref[...]
    h = jnp.maximum(h, 0.0)
    # Layer 2
    h = jnp.dot(h, w2_ref[...], preferred_element_type=jnp.float32) + b2_ref[...]
    h = jnp.maximum(h, 0.0)
    # Layer 3
    h = jnp.dot(h, w3_ref[...], preferred_element_type=jnp.float32) + b3_ref[...]
    h = jnp.maximum(h, 0.0)
    # Output layer: (TB, H) @ (H, 128) — only column 0 is real, rest is zero padding,
    # kept so the store is a full-width unmasked vst.
    o_ref[...] = (jnp.dot(h, w4_ref[...], preferred_element_type=jnp.float32)
                  + b4_ref[...]).astype(o_ref.dtype)


def _init_linear(key, in_dim, out_dim):
    """PyTorch-style nn.Linear init: U(-1/sqrt(in), 1/sqrt(in)). Returns (W.T, b)."""
    kw, kb = jax.random.split(key)
    bound = 1.0 / math.sqrt(in_dim)
    # PyTorch weight is (out, in); we store transposed (in, out) so the kernel does x @ W.
    w = jax.random.uniform(kw, (out_dim, in_dim), jnp.float32, -bound, bound)
    b = jax.random.uniform(kb, (out_dim,), jnp.float32, -bound, bound)
    return w.T, b.reshape(1, out_dim)


def make_critic_params(key, obs_dim, action_dim, hidden_size):
    k1, k2, k3, k4 = jax.random.split(key, 4)
    w1, b1 = _init_linear(k1, obs_dim + action_dim, hidden_size)
    w2, b2 = _init_linear(k2, hidden_size, hidden_size)
    w3, b3 = _init_linear(k3, hidden_size, hidden_size)
    w4, b4 = _init_linear(k4, hidden_size, 1)
    # Zero-pad the final layer to OUT_PAD lanes so the kernel's output block is lane-dense.
    w4p = jnp.zeros((hidden_size, OUT_PAD), jnp.float32).at[:, :1].set(w4)
    b4p = jnp.zeros((1, OUT_PAD), jnp.float32).at[:, :1].set(b4)
    return dict(w1=w1, b1=b1, w2=w2, b2=b2, w3=w3, b3=b3,
                w4=w4, b4=b4, w4p=w4p, b4p=b4p)


def _round_up(x, m):
    return ((x + m - 1) // m) * m


def critic_forward(state, action, params, *, batch_tile=256):
    # Mirror PyTorch: action.unsqueeze(-1) if 1-D.
    if action.ndim == 1:
        action = action[:, None]
    B = state.shape[0]

    # Fold the concat into the wrapper: one lane-contiguous copy, one MXU push in layer 1.
    x = jnp.concatenate([state, action], axis=1).astype(jnp.float32)
    din = x.shape[1]
    hid = params["w1"].shape[1]

    # Batch tile: multiple of 8 sublanes; at most `batch_tile` rows per grid step.
    tb = min(batch_tile, _round_up(B, 8))
    b_pad = _round_up(B, tb)
    if b_pad != B:
        x = jnp.pad(x, ((0, b_pad - B), (0, 0)))
    grid = (b_pad // tb,)

    row_spec = pl.BlockSpec((tb, din), lambda i: (i, 0))
    out_spec = pl.BlockSpec((tb, OUT_PAD), lambda i: (i, 0))

    def resident(arr):
        # Same block index for every grid step -> stays VMEM-resident, no re-DMA.
        return pl.BlockSpec(arr.shape, lambda i: (0, 0))

    weight_args = (params["w1"], params["b1"],
                   params["w2"], params["b2"],
                   params["w3"], params["b3"],
                   params["w4p"], params["b4p"])

    weight_bytes = sum(int(w.size) * 4 for w in weight_args)
    cost = pl.CostEstimate(
        flops=2 * b_pad * (din * hid + hid * hid + hid * hid + hid * OUT_PAD),
        transcendentals=0,
        bytes_accessed=b_pad * din * 4 + weight_bytes + b_pad * OUT_PAD * 4,
    )

    out = pl.pallas_call(
        critic_kernel,
        out_shape=jax.ShapeDtypeStruct((b_pad, OUT_PAD), jnp.float32),
        grid=grid,
        in_specs=[row_spec] + [resident(w) for w in weight_args],
        out_specs=out_spec,
        compiler_params=pltpu.CompilerParams(
            dimension_semantics=("parallel",)),
        cost_estimate=cost,
    )(x, *weight_args)

    # Drop the batch padding and the lane padding of the final layer.
    return out[:B, :1]


def critic_reference(state, action, params):
    if action.ndim == 1:
        action = action[:, None]
    x = jnp.concatenate([state, action], axis=1)
    h = jnp.maximum(x @ params["w1"] + params["b1"], 0.0)
    h = jnp.maximum(h @ params["w2"] + params["b2"], 0.0)
    h = jnp.maximum(h @ params["w3"] + params["b3"], 0.0)
    return h @ params["w4"] + params["b4"]


if __name__ == "__main__":
    key = jax.random.PRNGKey(0)
    k_params, k_state, k_action = jax.random.split(key, 3)

    batch = 8
    obs_dim = 16
    action_dim = 4
    hidden_size = 32

    params = make_critic_params(k_params, obs_dim, action_dim, hidden_size)
    state = jax.random.normal(k_state, (batch, obs_dim), jnp.float32)
    action = jax.random.normal(k_action, (batch, action_dim), jnp.float32)

    q = critic_forward(state, action, params)
    jax.block_until_ready(q)

    q_ref = critic_reference(state, action, params)
    assert q.shape == (batch, 1), q.shape
    assert jnp.allclose(q, q_ref, atol=1e-5, rtol=1e-5), (q, q_ref)

    print("KERNEL_OK")
</pallas_src>

<mosaic_0001>
module attributes {stable_mosaic.version = 11 : i64} {
  func.func @critic_kernel(%arg0: i32, %arg1: memref<8x20xf32, #tpu.memory_space<vmem>>, %arg2: memref<20x32xf32, #tpu.memory_space<vmem>>, %arg3: memref<1x32xf32, #tpu.memory_space<vmem>>, %arg4: memref<32x32xf32, #tpu.memory_space<vmem>>, %arg5: memref<1x32xf32, #tpu.memory_space<vmem>>, %arg6: memref<32x32xf32, #tpu.memory_space<vmem>>, %arg7: memref<1x32xf32, #tpu.memory_space<vmem>>, %arg8: memref<32x128xf32, #tpu.memory_space<vmem>>, %arg9: memref<1x128xf32, #tpu.memory_space<vmem>>, %arg10: memref<8x128xf32, #tpu.memory_space<vmem>>) attributes {dimension_semantics = [#tpu.dimension_semantics<parallel>], iteration_bounds = array<i64: 1>, scalar_prefetch = 0 : i64, scratch_operands = 0 : i64, tpu.core_type = #tpu.core_type<tc>, window_params = [{transform_indices = @transform_0, window_bounds = array<i64: 8, 20>}, {pipeline_mode = #tpu.pipeline_mode<synchronous>, transform_indices = @transform_1, window_bounds = array<i64: 20, 32>}, {pipeline_mode = #tpu.pipeline_mode<synchronous>, transform_indices = @transform_2, window_bounds = array<i64: 1, 32>}, {pipeline_mode = #tpu.pipeline_mode<synchronous>, transform_indices = @transform_3, window_bounds = array<i64: 32, 32>}, {pipeline_mode = #tpu.pipeline_mode<synchronous>, transform_indices = @transform_4, window_bounds = array<i64: 1, 32>}, {pipeline_mode = #tpu.pipeline_mode<synchronous>, transform_indices = @transform_5, window_bounds = array<i64: 32, 32>}, {pipeline_mode = #tpu.pipeline_mode<synchronous>, transform_indices = @transform_6, window_bounds = array<i64: 1, 32>}, {pipeline_mode = #tpu.pipeline_mode<synchronous>, transform_indices = @transform_7, window_bounds = array<i64: 32, 128>}, {pipeline_mode = #tpu.pipeline_mode<synchronous>, transform_indices = @transform_8, window_bounds = array<i64: 1, 128>}, {transform_indices = @transform_9, window_bounds = array<i64: 8, 128>}]} {
    %c0 = arith.constant 0 : index
    %c0_0 = arith.constant 0 : index
    %0 = vector.load %arg1[%c0, %c0_0] : memref<8x20xf32, #tpu.memory_space<vmem>>, vector<8x20xf32>
    %c0_1 = arith.constant 0 : index
    %c0_2 = arith.constant 0 : index
    %1 = vector.load %arg2[%c0_1, %c0_2] : memref<20x32xf32, #tpu.memory_space<vmem>>, vector<20x32xf32>
    %cst = arith.constant dense<0.000000e+00> : vector<8x32xf32>
    %2 = tpu.matmul %0, %1, %cst {dimension_numbers = #tpu.dot_dimension_numbers<[1], [0], [0], [1], [0, 0, 1, 1], [], []>} : vector<8x20xf32>, vector<20x32xf32>, vector<8x32xf32> -> vector<8x32xf32>
    %c0_3 = arith.constant 0 : index
    %c0_4 = arith.constant 0 : index
    %3 = vector.load %arg3[%c0_3, %c0_4] : memref<1x32xf32, #tpu.memory_space<vmem>>, vector<1x32xf32>
    %4 = vector.broadcast %3 : vector<1x32xf32> to vector<8x32xf32>
    %5 = arith.addf %2, %4 : vector<8x32xf32>
    %cst_5 = arith.constant 0.000000e+00 : f32
    %6 = vector.broadcast %cst_5 : f32 to vector<8x32xf32>
    %7 = arith.maximumf %5, %6 : vector<8x32xf32>
    %c0_6 = arith.constant 0 : index
    %c0_7 = arith.constant 0 : index
    %8 = vector.load %arg4[%c0_6, %c0_7] : memref<32x32xf32, #tpu.memory_space<vmem>>, vector<32x32xf32>
    %cst_8 = arith.constant dense<0.000000e+00> : vector<8x32xf32>
    %9 = tpu.matmul %7, %8, %cst_8 {dimension_numbers = #tpu.dot_dimension_numbers<[1], [0], [0], [1], [0, 0, 1, 1], [], []>} : vector<8x32xf32>, vector<32x32xf32>, vector<8x32xf32> -> vector<8x32xf32>
    %c0_9 = arith.constant 0 : index
    %c0_10 = arith.constant 0 : index
    %10 = vector.load %arg5[%c0_9, %c0_10] : memref<1x32xf32, #tpu.memory_space<vmem>>, vector<1x32xf32>
    %11 = vector.broadcast %10 : vector<1x32xf32> to vector<8x32xf32>
    %12 = arith.addf %9, %11 : vector<8x32xf32>
    %cst_11 = arith.constant 0.000000e+00 : f32
    %13 = vector.broadcast %cst_11 : f32 to vector<8x32xf32>
    %14 = arith.maximumf %12, %13 : vector<8x32xf32>
    %c0_12 = arith.constant 0 : index
    %c0_13 = arith.constant 0 : index
    %15 = vector.load %arg6[%c0_12, %c0_13] : memref<32x32xf32, #tpu.memory_space<vmem>>, vector<32x32xf32>
    %cst_14 = arith.constant dense<0.000000e+00> : vector<8x32xf32>
    %16 = tpu.matmul %14, %15, %cst_14 {dimension_numbers = #tpu.dot_dimension_numbers<[1], [0], [0], [1], [0, 0, 1, 1], [], []>} : vector<8x32xf32>, vector<32x32xf32>, vector<8x32xf32> -> vector<8x32xf32>
    %c0_15 = arith.constant 0 : index
    %c0_16 = arith.constant 0 : index
    %17 = vector.load %arg7[%c0_15, %c0_16] : memref<1x32xf32, #tpu.memory_space<vmem>>, vector<1x32xf32>
    %18 = vector.broadcast %17 : vector<1x32xf32> to vector<8x32xf32>
    %19 = arith.addf %16, %18 : vector<8x32xf32>
    %cst_17 = arith.constant 0.000000e+00 : f32
    %20 = vector.broadcast %cst_17 : f32 to vector<8x32xf32>
    %21 = arith.maximumf %19, %20 : vector<8x32xf32>
    %c0_18 = arith.constant 0 : index
    %c0_19 = arith.constant 0 : index
    %22 = vector.load %arg8[%c0_18, %c0_19] : memref<32x128xf32, #tpu.memory_space<vmem>>, vector<32x128xf32>
    %cst_20 = arith.constant dense<0.000000e+00> : vector<8x128xf32>
    %23 = tpu.matmul %21, %22, %cst_20 {dimension_numbers = #tpu.dot_dimension_numbers<[1], [0], [0], [1], [0, 0, 1, 1], [], []>} : vector<8x32xf32>, vector<32x128xf32>, vector<8x128xf32> -> vector<8x128xf32>
    %c0_21 = arith.constant 0 : index
    %c0_22 = arith.constant 0 : index
    %24 = vector.load %arg9[%c0_21, %c0_22] : memref<1x128xf32, #tpu.memory_space<vmem>>, vector<1x128xf32>
    %25 = vector.broadcast %24 : vector<1x128xf32> to vector<8x128xf32>
    %26 = arith.addf %23, %25 : vector<8x128xf32>
    %c0_23 = arith.constant 0 : index
    %c0_24 = arith.constant 0 : index
    %27 = vector.load %arg10[%c0_23, %c0_24] : memref<8x128xf32, #tpu.memory_space<vmem>>, vector<8x128xf32>
    tpu.vector_store %arg10[%c0_23, %c0_24], %26 {strides = array<i32>} : memref<8x128xf32, #tpu.memory_space<vmem>>, vector<8x128xf32>,
    return
  }
  func.func @transform_0(%arg0: i32) -> (i32, i32) {
    %c0_i32 = arith.constant 0 : i32
    %c0_i32_0 = arith.constant 0 : i32
    return %arg0, %c0_i32 : i32, i32
  }
  func.func @transform_1(%arg0: i32) -> (i32, i32) {
    %c0_i32 = arith.constant 0 : i32
    %c0_i32_0 = arith.constant 0 : i32
    %c0_i32_1 = arith.constant 0 : i32
    return %c0_i32, %c0_i32_0 : i32, i32
  }
  func.func @transform_2(%arg0: i32) -> (i32, i32) {
    %c0_i32 = arith.constant 0 : i32
    %c0_i32_0 = arith.constant 0 : i32
    %c0_i32_1 = arith.constant 0 : i32
    return %c0_i32, %c0_i32_0 : i32, i32
  }
  func.func @transform_3(%arg0: i32) -> (i32, i32) {
    %c0_i32 = arith.constant 0 : i32
    %c0_i32_0 = arith.constant 0 : i32
    %c0_i32_1 = arith.constant 0 : i32
    return %c0_i32, %c0_i32_0 : i32, i32
  }
  func.func @transform_4(%arg0: i32) -> (i32, i32) {
    %c0_i32 = arith.constant 0 : i32
    %c0_i32_0 = arith.constant 0 : i32
    %c0_i32_1 = arith.constant 0 : i32
    return %c0_i32, %c0_i32_0 : i32, i32
  }
  func.func @transform_5(%arg0: i32) -> (i32, i32) {
    %c0_i32 = arith.constant 0 : i32
    %c0_i32_0 = arith.constant 0 : i32
    %c0_i32_1 = arith.constant 0 : i32
    return %c0_i32, %c0_i32_0 : i32, i32
  }
  func.func @transform_6(%arg0: i32) -> (i32, i32) {
    %c0_i32 = arith.constant 0 : i32
    %c0_i32_0 = arith.constant 0 : i32
    %c0_i32_1 = arith.constant 0 : i32
    return %c0_i32, %c0_i32_0 : i32, i32
  }
  func.func @transform_7(%arg0: i32) -> (i32, i32) {
    %c0_i32 = arith.constant 0 : i32
    %c0_i32_0 = arith.constant 0 : i32
    %c0_i32_1 = arith.constant 0 : i32
    return %c0_i32, %c0_i32_0 : i32, i32
  }
  func.func @transform_8(%arg0: i32) -> (i32, i32) {
    %c0_i32 = arith.constant 0 : i32
    %c0_i32_0 = arith.constant 0 : i32
    %c0_i32_1 = arith.constant 0 : i32
    return %c0_i32, %c0_i32_0 : i32, i32
  }
  func.func @transform_9(%arg0: i32) -> (i32, i32) {
    %c0_i32 = arith.constant 0 : i32
    %c0_i32_0 = arith.constant 0 : i32
    return %arg0, %c0_i32 : i32, i32
  }
}

</mosaic_0001>

<llo_original>
// kernel: tpu_custom_call.1
$region0: #{tpu_custom_call.1}
  #allocation0 [shape = 'u32[]', space=smem, size = 0x4, offset = 0x4, fixed_abs, tag = 'smem constant byte address 0x4 - core index']
  #allocation1 [shape = 'u32[144,128]{1,0:T(1,128)}', space=vmem, size = 0x12000, scoped, tag = 'internal scratch']
  %s0 = inlined_call_operand.hbm [shape: f32[8,20], index: 0, kind: input, shape index: {}]
  %s1 = inlined_call_operand.hbm [shape: f32[20,32], index: 1, kind: input, shape index: {}]
  %s2 = inlined_call_operand.vmem [shape: f32[1,32], index: 2, kind: input, shape index: {}]
  %s3 = inlined_call_operand.hbm [shape: f32[32,32], index: 3, kind: input, shape index: {}]
  %s4 = inlined_call_operand.vmem [shape: f32[1,32], index: 4, kind: input, shape index: {}]
  %s5 = inlined_call_operand.hbm [shape: f32[32,32], index: 5, kind: input, shape index: {}]
  %s6 = inlined_call_operand.vmem [shape: f32[1,32], index: 6, kind: input, shape index: {}]
  %s7 = inlined_call_operand.hbm [shape: f32[32,128], index: 7, kind: input, shape index: {}]
  %s8 = inlined_call_operand.vmem [shape: f32[1,128], index: 8, kind: input, shape index: {}]
  %s9 = inlined_call_operand.hbm [shape: f32[8,128], index: 9, kind: output, shape index: {}]
  %s10 = sld [smem:[#allocation0]]
  $region66: #{tpu_custom_call.1} parent=0
    _
  %s12 = ssub.s32 1, %s10
  %s13 = scalar_select 0, %s12, %s10
  $region1: #{tpu_custom_call.1} parent=0
    #allocation2 [shape = 'u8[4096]{0}', space=vmem, size = 0x1000, scoped, tag = 'input window, operand 0, single buffered']
    #allocation3 [shape = 's32[1]{0}', space=sflag, size = 0x4, scoped, tag = 'scoped memory for tpu_custom_call.1']
    #allocation4 [shape = 's32[1]{0}', space=sflag, size = 0x4, scoped, tag = 'scoped memory for tpu_custom_call.1']
    #allocation5 [shape = 'u8[12288]{0}', space=vmem, size = 0x3000, scoped, tag = 'input window, operand 1, single buffered']
    #allocation6 [shape = 's32[1]{0}', space=sflag, size = 0x4, scoped, tag = 'scoped memory for tpu_custom_call.1']
    #allocation7 [shape = 'u8[16384]{0}', space=vmem, size = 0x4000, scoped, tag = 'input window, operand 3, single buffered']
    #allocation8 [shape = 'u8[16384]{0}', space=vmem, size = 0x4000, scoped, tag = 'input window, operand 5, single buffered']
    #allocation9 [shape = 's32[1]{0}', space=sflag, size = 0x4, scoped, tag = 'scoped memory for tpu_custom_call.1']
    #allocation10 [shape = 'u8[16384]{0}', space=vmem, size = 0x4000, scoped, tag = 'input window, operand 7, single buffered']
    #allocation11 [shape = 'u8[4096]{0}', space=vmem, size = 0x1000, scoped, tag = 'output window, operand 0, single buffered']
    %14 = vsyncpa [#allocation3], 0
    %15 = vsyncpa [#allocation6], 0
    %16 = vsyncpa [#allocation9], 0
    %17 = vsyncpa [#allocation4], 0
    // Predicated region
    $region2: #{tpu_custom_call.1} parent=1 // pred_check
      _
    $region3: #{tpu_custom_call.1} parent=1 // pred_check_branch
      %19 = sbr.rel (0) target = $region5
    $region4: #{tpu_custom_call.1} parent=1 // pred_region
      %s21 = ssub.s32 128, 128
      %22 = vsyncadd [#allocation3], %s21
      %s24 = sshll.u32 [#allocation2], 4
      %s25 = int_to_ptr.vmem [resolvable:$true] %s24
      %27 = dma.hbm_to_vmem [thread:$0]  %s0, 128, %s25, [#allocation3]
    $region5: #{tpu_custom_call.1} parent=1 // pred_fallthru
      _
    // Predicated region
    $region6: #{tpu_custom_call.1} parent=1 // pred_check
      _
    $region7: #{tpu_custom_call.1} parent=1 // pred_check_branch
      %29 = sbr.rel (0) target = $region9
    $region8: #{tpu_custom_call.1} parent=1 // pred_region
      %s31 = ssub.s32 384, 384
      %32 = vsyncadd [#allocation6], %s31
      %s33 = sshll.u32 [#allocation5], 4
      %s34 = int_to_ptr.vmem [resolvable:$true] %s33
      %39 = dma.hbm_to_vmem [thread:$0]  %s1, 384, %s34, [#allocation6], 128, 128, 8
    $region9: #{tpu_custom_call.1} parent=1 // pred_fallthru
      _
    // Predicated region
    $region10: #{tpu_custom_call.1} parent=1 // pred_check
      _
    $region11: #{tpu_custom_call.1} parent=1 // pred_check_branch
      %41 = sbr.rel (0) target = $region13
    $region12: #{tpu_custom_call.1} parent=1 // pred_region
      _
    $region13: #{tpu_custom_call.1} parent=1 // pred_fallthru
      _
    // Predicated region
    $region14: #{tpu_custom_call.1} parent=1 // pred_check
      _
    $region15: #{tpu_custom_call.1} parent=1 // pred_check_branch
      %43 = sbr.rel (0) target = $region17
    $region16: #{tpu_custom_call.1} parent=1 // pred_region
      %s45 = ssub.s32 512, 512
      %46 = vsyncadd [#allocation6], %s45
      %s47 = sshll.u32 [#allocation7], 4
      %s48 = int_to_ptr.vmem [resolvable:$true] %s47
      %53 = dma.hbm_to_vmem [thread:$0]  %s3, 512, %s48, [#allocation6], 128, 128, 8
    $region17: #{tpu_custom_call.1} parent=1 // pred_fallthru
      _
    // Predicated region
    $region18: #{tpu_custom_call.1} parent=1 // pred_check
      _
    $region19: #{tpu_custom_call.1} parent=1 // pred_check_branch
      %55 = sbr.rel (0) target = $region21
    $region20: #{tpu_custom_call.1} parent=1 // pred_region
      _
    $region21: #{tpu_custom_call.1} parent=1 // pred_fallthru
      _
    // Predicated region
    $region22: #{tpu_custom_call.1} parent=1 // pred_check
      _
    $region23: #{tpu_custom_call.1} parent=1 // pred_check_branch
      %57 = sbr.rel (0) target = $region25
    $region24: #{tpu_custom_call.1} parent=1 // pred_region
      %s59 = ssub.s32 512, 512
      %60 = vsyncadd [#allocation9], %s59
      %s61 = sshll.u32 [#allocation8], 4
      %s62 = int_to_ptr.vmem [resolvable:$true] %s61
      %67 = dma.hbm_to_vmem [thread:$0]  %s5, 512, %s62, [#allocation9], 128, 128, 8
    $region25: #{tpu_custom_call.1} parent=1 // pred_fallthru
      _
    // Predicated region
    $region26: #{tpu_custom_call.1} parent=1 // pred_check
      _
    $region27: #{tpu_custom_call.1} parent=1 // pred_check_branch
      %69 = sbr.rel (0) target = $region29
    $region28: #{tpu_custom_call.1} parent=1 // pred_region
      _
    $region29: #{tpu_custom_call.1} parent=1 // pred_fallthru
      _
    // Predicated region
    $region30: #{tpu_custom_call.1} parent=1 // pred_check
      _
    $region31: #{tpu_custom_call.1} parent=1 // pred_check_branch
      %71 = sbr.rel (0) target = $region33
    $region32: #{tpu_custom_call.1} parent=1 // pred_region
      %s73 = ssub.s32 512, 512
      %74 = vsyncadd [#allocation9], %s73
      %s75 = sshll.u32 [#allocation10], 4
      %s76 = int_to_ptr.vmem [resolvable:$true] %s75
      %81 = dma.hbm_to_vmem [thread:$0]  %s7, 512, %s76, [#allocation9], 128, 128, 8
    $region33: #{tpu_custom_call.1} parent=1 // pred_fallthru
      _
    // Predicated region
    $region34: #{tpu_custom_call.1} parent=1 // pred_check
      _
    $region35: #{tpu_custom_call.1} parent=1 // pred_check_branch
      %83 = sbr.rel (0) target = $region37
    $region36: #{tpu_custom_call.1} parent=1 // pred_region
      _
    $region37: #{tpu_custom_call.1} parent=1 // pred_fallthru
      _
    // Predicated region
    $region38: #{tpu_custom_call.1} parent=1 // pred_check
      _
    $region39: #{tpu_custom_call.1} parent=1 // pred_check_branch
      %85 = sbr.rel (0) target = $region41
    $region40: #{tpu_custom_call.1} parent=1 // pred_region
      %86 = dma.done [#allocation3], 128
    $region41: #{tpu_custom_call.1} parent=1 // pred_fallthru
      _
    // Predicated region
    $region42: #{tpu_custom_call.1} parent=1 // pred_check
      _
    $region43: #{tpu_custom_call.1} parent=1 // pred_check_branch
      %88 = sbr.rel (0) target = $region45
    $region44: #{tpu_custom_call.1} parent=1 // pred_region
      %89 = dma.done [#allocation6], 384
    $region45: #{tpu_custom_call.1} parent=1 // pred_fallthru
      _
    // Predicated region
    $region46: #{tpu_custom_call.1} parent=1 // pred_check
      _
    $region47: #{tpu_custom_call.1} parent=1 // pred_check_branch
      %91 = sbr.rel (0) target = $region49
    $region48: #{tpu_custom_call.1} parent=1 // pred_region
      %92 = dma.done [#allocation6], 512
    $region49: #{tpu_custom_call.1} parent=1 // pred_fallthru
      _
    // Predicated region
    $region50: #{tpu_custom_call.1} parent=1 // pred_check
      _
    $region51: #{tpu_custom_call.1} parent=1 // pred_check_branch
      %94 = sbr.rel (0) target = $region53
    $region52: #{tpu_custom_call.1} parent=1 // pred_region
      %95 = dma.done [#allocation9], 512
    $region53: #{tpu_custom_call.1} parent=1 // pred_fallthru
      _
    // Predicated region
    $region54: #{tpu_custom_call.1} parent=1 // pred_check
      _
    $region55: #{tpu_custom_call.1} parent=1 // pred_check_branch
      %97 = sbr.rel (0) target = $region57
    $region56: #{tpu_custom_call.1} parent=1 // pred_region
      %98 = dma.done [#allocation9], 512
    $region57: #{tpu_custom_call.1} parent=1 // pred_fallthru
      _
    %v99 = vld [vmem:[#allocation2] sm:$0xff]
    %v100 = vld [vmem:[#allocation5] sm:$0xff]
    %v101 = vld [vmem:[#allocation5 + $0x8] sm:$0xff]
    %v102 = vld [vmem:[#allocation5 + $0x10] sm:$0xf]
    %v103 = vld [vmem:[%s2] sm:$0x1]
    %v105 = vlaneseq
    %v106 = vshrl.u32 %v105, 7
    %v107 = vsub.s32 0, %v106
    %v108 = vrot.slane %v103, %v107
    %vm110 = vcmask 162816
    %v112 = vsel %vm110, %v99, 0
    %vm114 = vcmask 1043456
    %v116 = vsel %vm114, %v102, 0
    %118 = vmatprep.subr.mxu0 0.0
    %119 = vmatpush1.msra.mxu0 %v100
    %120 = vmatprep.subr.mxu0 0.0
    %121 = vmatpush1.msra.mxu0 %v101
    %122 = vmatprep.subr.mxu0 0.0
    %123 = vmatpush1.msra.mxu0 %v116
    %124 = vmatprep.subr.mxu0 0.0
    %125 = vmatpush1.msra.mxu0 0.0
    %126 = vmatprep.subr.mxu0 0.0
    %127 = vmatpush1.msra.mxu0 0.0
    %128 = vmatprep.subr.mxu0 0.0
    %129 = vmatpush1.msra.mxu0 0.0
    %130 = vmatprep.subr.mxu0 0.0
    %131 = vmatpush1.msra.mxu0 0.0
    %132 = vmatprep.subr.mxu0 0.0
    %133 = vmatpush1.msra.mxu0 0.0
    %134 = vmatprep.subr.mxu0 0.0
    %135 = vmatpush1.msra.mxu0 0.0
    %136 = vmatprep.subr.mxu0 0.0
    %137 = vmatpush1.msra.mxu0 0.0
    %138 = vmatprep.subr.mxu0 0.0
    %139 = vmatpush1.msra.mxu0 0.0
    %140 = vmatprep.subr.mxu0 0.0
    %141 = vmatpush1.msra.mxu0 0.0
    %142 = vmatprep.subr.mxu0 0.0
    %143 = vmatpush1.msra.mxu0 0.0
    %144 = vmatprep.subr.mxu0 0.0
    %145 = vmatpush1.msra.mxu0 0.0
    %146 = vmatprep.subr.mxu0 0.0
    %147 = vmatpush1.msra.mxu0 0.0
    %148 = vmatprep.subr.mxu0 0.0
    %149 = vmatpush1.msra.mxu0 0.0
    %150 = vmatprep.subr.mxu0 0.0
    %151 = vmatpush1.msra.mxu0 0.0
    %152 = vmatprep.subr.mxu0 0.0
    %153 = vmatpush1.msra.mxu0 0.0
    %154 = vmatprep.subr.mxu0 0.0
    %155 = vmatpush1.msra.mxu0 0.0
    %156 = vmatprep.subr.mxu0 0.0
    %157 = vmatpush1.msra.mxu0 0.0
    %158 = vmatprep.subr.mxu0 0.0
    %159 = vmatpush1.msra.mxu0 0.0
    %160 = vmatprep.subr.mxu0 0.0
    %161 = vmatpush1.msra.mxu0 0.0
    %162 = vmatprep.subr.mxu0 0.0
    %163 = vmatpush1.msra.mxu0 0.0
    %164 = vmatprep.subr.mxu0 0.0
    %165 = vmatpush1.msra.mxu0 0.0
    %166 = vmatprep.subr.mxu0 0.0
    %167 = vmatpush1.msra.mxu0 0.0
    %168 = vmatprep.subr.mxu0 0.0
    %169 = vmatpush1.msra.mxu0 0.0
    %170 = vmatprep.subr.mxu0 0.0
    %171 = vmatpush1.msra.mxu0 0.0
    %172 = vmatprep.subr.mxu0 0.0
    %173 = vmatpush1.msra.mxu0 0.0
    %174 = vmatprep.subr.mxu0 0.0
    %175 = vmatpush1.msra.mxu0 0.0
    %176 = vmatprep.subr.mxu0 0.0
    %177 = vmatpush1.msra.mxu0 0.0
    %178 = vmatprep.subr.mxu0 0.0
    %179 = vmatpush1.msra.mxu0 0.0
    %180 = vmatprep.subr.mxu0 0.0
    %181 = vmatpush1.msra.mxu0 0.0
    %182 = vmatprep.mubr.f32.mxu0 0.0
    %183 = vmatmul.mubr.f32.gmra.mrb[0].mxu0 %v112
    %v184 = vpop.f32.mrb[0].mxu0
    %v185 = vadd.f32 %v108, %v184
    %v186 = vpop.f32.mrb[0].mxu0
    %187 = vdwg.mxu0
    %v188 = vmax.f32 %v185, 0.0
    %v189 = vld [vmem:[#allocation7] sm:$0xff]
    %v190 = vld [vmem:[#allocation7 + $0x8] sm:$0xff]
    %v191 = vld [vmem:[#allocation7 + $0x10] sm:$0xff]
    %v192 = vld [vmem:[#allocation7 + $0x18] sm:$0xff]
    %v193 = vld [vmem:[%s4] sm:$0x1]
    %v195 = vlaneseq
    %v196 = vshrl.u32 %v195, 7
    %v197 = vsub.s32 0, %v196
    %v198 = vrot.slane %v193, %v197
    %vm200 = vcmask 261120
    %v202 = vsel %vm200, %v188, 0
    %204 = vmatprep.subr.mxu0 0.0
    %205 = vmatpush1.msra.mxu0 %v189
    %206 = vmatprep.subr.mxu0 0.0
    %207 = vmatpush1.msra.mxu0 %v190
    %208 = vmatprep.subr.mxu0 0.0
    %209 = vmatpush1.msra.mxu0 %v191
    %210 = vmatprep.subr.mxu0 0.0
    %211 = vmatpush1.msra.mxu0 %v192
    %212 = vmatprep.subr.mxu0 0.0
    %213 = vmatpush1.msra.mxu0 0.0
    %214 = vmatprep.subr.mxu0 0.0
    %215 = vmatpush1.msra.mxu0 0.0
    %216 = vmatprep.subr.mxu0 0.0
    %217 = vmatpush1.msra.mxu0 0.0
    %218 = vmatprep.subr.mxu0 0.0
    %219 = vmatpush1.msra.mxu0 0.0
    %220 = vmatprep.subr.mxu0 0.0
    %221 = vmatpush1.msra.mxu0 0.0
    %222 = vmatprep.subr.mxu0 0.0
    %223 = vmatpush1.msra.mxu0 0.0
    %224 = vmatprep.subr.mxu0 0.0
    %225 = vmatpush1.msra.mxu0 0.0
    %226 = vmatprep.subr.mxu0 0.0
    %227 = vmatpush1.msra.mxu0 0.0
    %228 = vmatprep.subr.mxu0 0.0
    %229 = vmatpush1.msra.mxu0 0.0
    %230 = vmatprep.subr.mxu0 0.0
    %231 = vmatpush1.msra.mxu0 0.0
    %232 = vmatprep.subr.mxu0 0.0
    %233 = vmatpush1.msra.mxu0 0.0
    %234 = vmatprep.subr.mxu0 0.0
    %235 = vmatpush1.msra.mxu0 0.0
    %236 = vmatprep.subr.mxu0 0.0
    %237 = vmatpush1.msra.mxu0 0.0
    %238 = vmatprep.subr.mxu0 0.0
    %239 = vmatpush1.msra.mxu0 0.0
    %240 = vmatprep.subr.mxu0 0.0
    %241 = vmatpush1.msra.mxu0 0.0
    %242 = vmatprep.subr.mxu0 0.0
    %243 = vmatpush1.msra.mxu0 0.0
    %244 = vmatprep.subr.mxu0 0.0
    %245 = vmatpush1.msra.mxu0 0.0
    %246 = vmatprep.subr.mxu0 0.0
    %247 = vmatpush1.msra.mxu0 0.0
    %248 = vmatprep.subr.mxu0 0.0
    %249 = vmatpush1.msra.mxu0 0.0
    %250 = vmatprep.subr.mxu0 0.0
    %251 = vmatpush1.msra.mxu0 0.0
    %252 = vmatprep.subr.mxu0 0.0
    %253 = vmatpush1.msra.mxu0 0.0
    %254 = vmatprep.subr.mxu0 0.0
    %255 = vmatpush1.msra.mxu0 0.0
    %256 = vmatprep.subr.mxu0 0.0
    %257 = vmatpush1.msra.mxu0 0.0
    %258 = vmatprep.subr.mxu0 0.0
    %259 = vmatpush1.msra.mxu0 0.0
    %260 = vmatprep.subr.mxu0 0.0
    %261 = vmatpush1.msra.mxu0 0.0
    %262 = vmatprep.subr.mxu0 0.0
    %263 = vmatpush1.msra.mxu0 0.0
    %264 = vmatprep.subr.mxu0 0.0
    %265 = vmatpush1.msra.mxu0 0.0
    %266 = vmatprep.subr.mxu0 0.0
    %267 = vmatpush1.msra.mxu0 0.0
    %268 = vmatprep.mubr.f32.mxu0 0.0
    %269 = vmatmul.mubr.f32.gmra.mrb[0].mxu0 %v202
    %v270 = vpop.f32.mrb[0].mxu0
    %v271 = vadd.f32 %v198, %v270
    %v272 = vpop.f32.mrb[0].mxu0
    %273 = vdwg.mxu0
    %v274 = vmax.f32 %v271, 0.0
    %v275 = vld [vmem:[#allocation8] sm:$0xff]
    %v276 = vld [vmem:[#allocation8 + $0x8] sm:$0xff]
    %v277 = vld [vmem:[#allocation8 + $0x10] sm:$0xff]
    %v278 = vld [vmem:[#allocation8 + $0x18] sm:$0xff]
    %v279 = vld [vmem:[%s6] sm:$0x1]
    %v281 = vlaneseq
    %v282 = vshrl.u32 %v281, 7
    %v283 = vsub.s32 0, %v282
    %v284 = vrot.slane %v279, %v283
    %v287 = vsel %vm200, %v274, 0
    %289 = vmatprep.subr.mxu0 0.0
    %290 = vmatpush1.msra.mxu0 %v275
    %291 = vmatprep.subr.mxu0 0.0
    %292 = vmatpush1.msra.mxu0 %v276
    %293 = vmatprep.subr.mxu0 0.0
    %294 = vmatpush1.msra.mxu0 %v277
    %295 = vmatprep.subr.mxu0 0.0
    %296 = vmatpush1.msra.mxu0 %v278
    %297 = vmatprep.subr.mxu0 0.0
    %298 = vmatpush1.msra.mxu0 0.0
    %299 = vmatprep.subr.mxu0 0.0
    %300 = vmatpush1.msra.mxu0 0.0
    %301 = vmatprep.subr.mxu0 0.0
    %302 = vmatpush1.msra.mxu0 0.0
    %303 = vmatprep.subr.mxu0 0.0
    %304 = vmatpush1.msra.mxu0 0.0
    %305 = vmatprep.subr.mxu0 0.0
    %306 = vmatpush1.msra.mxu0 0.0
    %307 = vmatprep.subr.mxu0 0.0
    %308 = vmatpush1.msra.mxu0 0.0
    %309 = vmatprep.subr.mxu0 0.0
    %310 = vmatpush1.msra.mxu0 0.0
    %311 = vmatprep.subr.mxu0 0.0
    %312 = vmatpush1.msra.mxu0 0.0
    %313 = vmatprep.subr.mxu0 0.0
    %314 = vmatpush1.msra.mxu0 0.0
    %315 = vmatprep.subr.mxu0 0.0
    %316 = vmatpush1.msra.mxu0 0.0
    %317 = vmatprep.subr.mxu0 0.0
    %318 = vmatpush1.msra.mxu0 0.0
    %319 = vmatprep.subr.mxu0 0.0
    %320 = vmatpush1.msra.mxu0 0.0
    %321 = vmatprep.subr.mxu0 0.0
    %322 = vmatpush1.msra.mxu0 0.0
    %323 = vmatprep.subr.mxu0 0.0
    %324 = vmatpush1.msra.mxu0 0.0
    %325 = vmatprep.subr.mxu0 0.0
    %326 = vmatpush1.msra.mxu0 0.0
    %327 = vmatprep.subr.mxu0 0.0
    %328 = vmatpush1.msra.mxu0 0.0
    %329 = vmatprep.subr.mxu0 0.0
    %330 = vmatpush1.msra.mxu0 0.0
    %331 = vmatprep.subr.mxu0 0.0
    %332 = vmatpush1.msra.mxu0 0.0
    %333 = vmatprep.subr.mxu0 0.0
    %334 = vmatpush1.msra.mxu0 0.0
    %335 = vmatprep.subr.mxu0 0.0
    %336 = vmatpush1.msra.mxu0 0.0
    %337 = vmatprep.subr.mxu0 0.0
    %338 = vmatpush1.msra.mxu0 0.0
    %339 = vmatprep.subr.mxu0 0.0
    %340 = vmatpush1.msra.mxu0 0.0
    %341 = vmatprep.subr.mxu0 0.0
    %342 = vmatpush1.msra.mxu0 0.0
    %343 = vmatprep.subr.mxu0 0.0
    %344 = vmatpush1.msra.mxu0 0.0
    %345 = vmatprep.subr.mxu0 0.0
    %346 = vmatpush1.msra.mxu0 0.0
    %347 = vmatprep.subr.mxu0 0.0
    %348 = vmatpush1.msra.mxu0 0.0
    %349 = vmatprep.subr.mxu0 0.0
    %350 = vmatpush1.msra.mxu0 0.0
    %351 = vmatprep.subr.mxu0 0.0
    %352 = vmatpush1.msra.mxu0 0.0
    %353 = vmatprep.mubr.f32.mxu0 0.0
    %354 = vmatmul.mubr.f32.gmra.mrb[0].mxu0 %v287
    %v355 = vpop.f32.mrb[0].mxu0
    %v356 = vadd.f32 %v284, %v355
    %v357 = vpop.f32.mrb[0].mxu0
    %358 = vdwg.mxu0
    %v359 = vmax.f32 %v356, 0.0
    %v360 = vld [vmem:[#allocation10] sm:$0xff]
    %v361 = vld [vmem:[#allocation10 + $0x8] sm:$0xff]
    %v362 = vld [vmem:[#allocation10 + $0x10] sm:$0xff]
    %v363 = vld [vmem:[#allocation10 + $0x18] sm:$0xff]
    %v364 = vld [vmem:[%s8] sm:$0x1]
    %v366 = vlaneseq
    %v367 = vshrl.u32 %v366, 7
    %v368 = vsub.s32 0, %v367
    %v369 = vrot.slane %v364, %v368
    %v372 = vsel %vm200, %v359, 0
    %374 = vmatprep.subr.mxu0 0.0
    %375 = vmatpush1.msra.mxu0 %v360
    %376 = vmatprep.subr.mxu0 0.0
    %377 = vmatpush1.msra.mxu0 %v361
    %378 = vmatprep.subr.mxu0 0.0
    %379 = vmatpush1.msra.mxu0 %v362
    %380 = vmatprep.subr.mxu0 0.0
    %381 = vmatpush1.msra.mxu0 %v363
    %382 = vmatprep.subr.mxu0 0.0
    %383 = vmatpush1.msra.mxu0 0.0
    %384 = vmatprep.subr.mxu0 0.0
    %385 = vmatpush1.msra.mxu0 0.0
    %386 = vmatprep.subr.mxu0 0.0
    %387 = vmatpush1.msra.mxu0 0.0
    %388 = vmatprep.subr.mxu0 0.0
    %389 = vmatpush1.msra.mxu0 0.0
    %390 = vmatprep.subr.mxu0 0.0
    %391 = vmatpush1.msra.mxu0 0.0
    %392 = vmatprep.subr.mxu0 0.0
    %393 = vmatpush1.msra.mxu0 0.0
    %394 = vmatprep.subr.mxu0 0.0
    %395 = vmatpush1.msra.mxu0 0.0
    %396 = vmatprep.subr.mxu0 0.0
    %397 = vmatpush1.msra.mxu0 0.0
    %398 = vmatprep.subr.mxu0 0.0
    %399 = vmatpush1.msra.mxu0 0.0
    %400 = vmatprep.subr.mxu0 0.0
    %401 = vmatpush1.msra.mxu0 0.0
    %402 = vmatprep.subr.mxu0 0.0
    %403 = vmatpush1.msra.mxu0 0.0
    %404 = vmatprep.subr.mxu0 0.0
    %405 = vmatpush1.msra.mxu0 0.0
    %406 = vmatprep.subr.mxu0 0.0
    %407 = vmatpush1.msra.mxu0 0.0
    %408 = vmatprep.subr.mxu0 0.0
    %409 = vmatpush1.msra.mxu0 0.0
    %410 = vmatprep.subr.mxu0 0.0
    %411 = vmatpush1.msra.mxu0 0.0
    %412 = vmatprep.subr.mxu0 0.0
    %413 = vmatpush1.msra.mxu0 0.0
    %414 = vmatprep.subr.mxu0 0.0
    %415 = vmatpush1.msra.mxu0 0.0
    %416 = vmatprep.subr.mxu0 0.0
    %417 = vmatpush1.msra.mxu0 0.0
    %418 = vmatprep.subr.mxu0 0.0
    %419 = vmatpush1.msra.mxu0 0.0
    %420 = vmatprep.subr.mxu0 0.0
    %421 = vmatpush1.msra.mxu0 0.0
    %422 = vmatprep.subr.mxu0 0.0
    %423 = vmatpush1.msra.mxu0 0.0
    %424 = vmatprep.subr.mxu0 0.0
    %425 = vmatpush1.msra.mxu0 0.0
    %426 = vmatprep.subr.mxu0 0.0
    %427 = vmatpush1.msra.mxu0 0.0
    %428 = vmatprep.subr.mxu0 0.0
    %429 = vmatpush1.msra.mxu0 0.0
    %430 = vmatprep.subr.mxu0 0.0
    %431 = vmatpush1.msra.mxu0 0.0
    %432 = vmatprep.subr.mxu0 0.0
    %433 = vmatpush1.msra.mxu0 0.0
    %434 = vmatprep.subr.mxu0 0.0
    %435 = vmatpush1.msra.mxu0 0.0
    %436 = vmatprep.subr.mxu0 0.0
    %437 = vmatpush1.msra.mxu0 0.0
    %438 = vmatprep.mubr.f32.mxu0 0.0
    %439 = vmatmul.mubr.f32.gmra.mrb[0].mxu0 %v372
    %v440 = vpop.f32.mrb[0].mxu0
    %v441 = vadd.f32 %v369, %v440
    %v442 = vpop.f32.mrb[0].mxu0
    %443 = vdwg.mxu0
    %444 = vst [vmem:[#allocation11] sm:$0xff] %v441
    // Predicated region
    $region58: #{tpu_custom_call.1} parent=1 // pred_check
      _
    $region59: #{tpu_custom_call.1} parent=1 // pred_check_branch
      %446 = sbr.rel (0) target = $region61
    $region60: #{tpu_custom_call.1} parent=1 // pred_region
      %s448 = ssub.s32 128, 128
      %449 = vsyncadd [#allocation4], %s448
      %s451 = sshll.u32 [#allocation11], 4
      %s452 = int_to_ptr.vmem [resolvable:$true] %s451
      %454 = dma.vmem_to_hbm [thread:$0]  %s452, 128, %s9, [#allocation4]
    $region61: #{tpu_custom_call.1} parent=1 // pred_fallthru
      _
    // Predicated region
    $region62: #{tpu_custom_call.1} parent=1 // pred_check
      _
    $region63: #{tpu_custom_call.1} parent=1 // pred_check_branch
      %456 = sbr.rel (0) target = $region65
    $region64: #{tpu_custom_call.1} parent=1 // pred_region
      %457 = dma.done [#allocation4], 128
    $region65: #{tpu_custom_call.1} parent=1 // pred_fallthru
      _
    %458 = vsyncpa [#allocation3], 1
    %459 = vsyncpa [#allocation6], 1
    %460 = vsyncpa [#allocation9], 1
    %461 = vsyncpa [#allocation4], 1

</llo_original>
